<compile_context>
chip_gen: v6e
topology: v6e:2x2x1
jax: 0.10.0
libtpu: 0.0.40
codegen_flags: <defaults>
</compile_context>

<pallas_src>
import functools

import numpy as np
import jax
import jax.numpy as jnp
from jax.experimental import pallas as pl
from jax.experimental.pallas import tpu as pltpu

HIDDEN = 128      # matches nn.Linear(..., 128)
LANE = 128        # TPU lane width
TILE_B = 256      # batch tile: feeds the 256x256 MXU on v6e/v7x (128 also fine on v5e)


def _round_up(x, m):
    return ((x + m - 1) // m) * m


def _actor_kernel(logstd_start, x_ref, w1_ref, b1_ref, w2_ref, b2_ref,
                  wh_ref, bh_ref, out_ref):
    """One batch tile: 2x (matmul + bias + ReLU) + fused head matmul + masked clip."""
    x = x_ref[...]                                                    # bf16 [TB, d_in]
    h1 = jnp.dot(x, w1_ref[...], preferred_element_type=jnp.float32) + b1_ref[...]
    h1 = jnp.maximum(h1, 0.0)
    h2 = jnp.dot(h1.astype(w2_ref.dtype), w2_ref[...],
                 preferred_element_type=jnp.float32) + b2_ref[...]
    h2 = jnp.maximum(h2, 0.0)
    # Fused heads: columns are [pi_d | mean | log_std | zero-pad] in one
    # lane-dense [TB, 128] tile (unmasked vst path).
    out = jnp.dot(h2.astype(wh_ref.dtype), wh_ref[...],
                  preferred_element_type=jnp.float32) + bh_ref[...]
    lane = jax.lax.broadcasted_iota(jnp.int32, out.shape, dimension=1)
    out_ref[...] = jnp.where(lane >= logstd_start,
                             jnp.clip(out, -20.0, 2.0), out)


def _fused_mlp(x_p, w1, b1, w2, b2, wh, bh, logstd_start):
    """x_p: bf16 [Bp, d_in] with Bp a multiple of TILE_B. Returns f32 [Bp, head_p]."""
    bp, d_in = x_p.shape
    hidden = w1.shape[1]
    head_p = wh.shape[1]

    flops = 2 * bp * (d_in * hidden + hidden * hidden + hidden * head_p)
    bytes_accessed = (bp * d_in * 2                                    # x (bf16)
                      + (d_in * hidden + hidden * hidden + hidden * head_p) * 2
                      + (hidden + hidden + head_p) * 4                 # f32 biases
                      + bp * head_p * 4)                               # f32 output

    return pl.pallas_call(
        functools.partial(_actor_kernel, logstd_start),
        out_shape=jax.ShapeDtypeStruct((bp, head_p), jnp.float32),
        grid=(bp // TILE_B,),
        in_specs=[
            pl.BlockSpec((TILE_B, d_in), lambda i: (i, 0)),    # batch-tiled activations
            pl.BlockSpec(w1.shape, lambda i: (0, 0)),          # weights stay resident
            pl.BlockSpec(b1.shape, lambda i: (0, 0)),
            pl.BlockSpec(w2.shape, lambda i: (0, 0)),
            pl.BlockSpec(b2.shape, lambda i: (0, 0)),
            pl.BlockSpec(wh.shape, lambda i: (0, 0)),
            pl.BlockSpec(bh.shape, lambda i: (0, 0)),
        ],
        out_specs=pl.BlockSpec((TILE_B, head_p), lambda i: (i, 0)),
        compiler_params=pltpu.CompilerParams(
            dimension_semantics=("parallel",),                 # megacore-shardable
            vmem_limit_bytes=32 * 1024 * 1024),
        cost_estimate=pl.CostEstimate(flops=flops, transcendentals=0,
                                      bytes_accessed=bytes_accessed),
    )(x_p, w1, b1, w2, b2, wh, bh)


@functools.partial(jax.jit, static_argnames=("out_c", "out_d"))
def _actor_padded_forward(x_rows, prep, *, out_c, out_d):
    """x_rows: f32 [Bp, d_in], Bp already bucketed to a TILE_B multiple."""
    head_cols = out_d + 2 * out_c
    out = _fused_mlp(x_rows.astype(jnp.bfloat16),
                     prep["w1"], prep["b1"], prep["w2"], prep["b2"],
                     prep["wh"], prep["bh"],
                     logstd_start=out_d + out_c)
    pi_d = out[:, :out_d]
    mean = out[:, out_d:out_d + out_c]
    log_std = out[:, out_d + out_c:head_cols]
    return pi_d, mean, log_std


def prepare_actor_params(params):
    """One-time fusion of the three heads + bf16 cast (not redone per call)."""
    out_d = params["wd"].shape[1]
    out_c = params["wm"].shape[1]
    head_cols = out_d + 2 * out_c
    head_p = _round_up(head_cols, LANE)

    wh = jnp.concatenate([params["wd"], params["wm"], params["ws"]], axis=1)
    wh = jnp.pad(wh, ((0, 0), (0, head_p - head_cols))).astype(jnp.bfloat16)
    bh = jnp.concatenate([params["bd"], params["bm"], params["bs"]])
    bh = jnp.pad(bh, (0, head_p - head_cols)).reshape(1, head_p)

    arrays = dict(
        w1=params["w1"].astype(jnp.bfloat16),
        b1=params["b1"].reshape(1, -1).astype(jnp.float32),
        w2=params["w2"].astype(jnp.bfloat16),
        b2=params["b2"].reshape(1, -1).astype(jnp.float32),
        wh=wh, bh=bh.astype(jnp.float32),
    )
    return {"arrays": jax.tree.map(jnp.asarray, arrays),
            "out_c": int(out_c), "out_d": int(out_d)}


def actor_forward(state, w, prep):
    """Mirrors Actor.forward: concat, drop NaN rows, MLP, three heads, clamp.

    The NaN-row filter produces a data-dependent shape, so it runs eagerly on
    host numpy; everything after it (pad/cast/kernel/column-slice) is one
    jitted call cached per batch bucket.
    """
    state_np = np.asarray(state, dtype=np.float32)
    w_np = np.asarray(w, dtype=np.float32)
    state_comp = np.concatenate((state_np, w_np), axis=1)      # [B, s_dim + wt_dim]
    keep = ~np.isnan(state_comp).any(axis=1)
    state_comp = state_comp[keep]                              # concrete boolean index
    b = state_comp.shape[0]

    out_c, out_d = prep["out_c"], prep["out_d"]
    bp = _round_up(max(b, 1), TILE_B)                          # bucket -> bounded recompiles
    x_rows = np.zeros((bp, state_comp.shape[1]), dtype=np.float32)
    x_rows[:b] = state_comp

    pi_d, mean, log_std = _actor_padded_forward(jnp.asarray(x_rows), prep["arrays"],
                                                out_c=out_c, out_d=out_d)
    return pi_d[:b], mean[:b], log_std[:b]


def _xavier_uniform(key, fan_in, fan_out):
    # matches torch.nn.init.xavier_uniform_ with gain=1; stored as [in, out]
    limit = (6.0 / (fan_in + fan_out)) ** 0.5
    return jax.random.uniform(key, (fan_in, fan_out), jnp.float32, -limit, limit)


def init_actor_params(key, s_dim, out_c, out_d, wt_dim):
    d_in = s_dim + wt_dim
    ks = jax.random.split(key, 5)
    return dict(
        w1=_xavier_uniform(ks[0], d_in, HIDDEN), b1=jnp.zeros((HIDDEN,), jnp.float32),
        w2=_xavier_uniform(ks[1], HIDDEN, HIDDEN), b2=jnp.zeros((HIDDEN,), jnp.float32),
        wd=_xavier_uniform(ks[2], HIDDEN, out_d), bd=jnp.zeros((out_d,), jnp.float32),
        wm=_xavier_uniform(ks[3], HIDDEN, out_c), bm=jnp.zeros((out_c,), jnp.float32),
        ws=_xavier_uniform(ks[4], HIDDEN, out_c), bs=jnp.zeros((out_c,), jnp.float32),
    )


if __name__ == "__main__":
    # Shapes consistent with the module: num_device=2, num_server=2
    #   out_d = num_device * (num_server + 1) = 6
    #   out_c = 2 * num_device * (num_server + 1) = 12
    s_dim, wt_dim, out_c, out_d = 8, 4, 12, 6
    batch = 4

    key = jax.random.PRNGKey(0)
    k_params, k_state, k_w = jax.random.split(key, 3)
    params = init_actor_params(k_params, s_dim, out_c, out_d, wt_dim)
    prep = prepare_actor_params(params)

    state = jax.random.normal(k_state, (batch, s_dim), jnp.float32)
    w = jax.random.uniform(k_w, (batch, wt_dim), jnp.float32)
    # Inject a NaN row to exercise the mask-and-drop path of forward().
    state = state.at[2, 0].set(jnp.nan)

    pi_d, mean, log_std = actor_forward(state, w, prep)
    jax.block_until_ready((pi_d, mean, log_std))

    # Reference in plain f32 JAX (same NaN filtering + MLP + clamp).
    sc = np.concatenate((np.asarray(state), np.asarray(w)), axis=1)
    sc = jnp.asarray(sc[~np.isnan(sc).any(axis=1)])
    h = jnp.maximum(sc @ params["w1"] + params["b1"], 0.0)
    h = jnp.maximum(h @ params["w2"] + params["b2"], 0.0)
    ref_pid = h @ params["wd"] + params["bd"]
    ref_mean = h @ params["wm"] + params["bm"]
    ref_ls = jnp.clip(h @ params["ws"] + params["bs"], -20.0, 2.0)

    assert pi_d.shape == (batch - 1, out_d)
    assert mean.shape == (batch - 1, out_c)
    assert log_std.shape == (batch - 1, out_c)
    # Kernel uses bf16 matmul operands with f32 accumulation -> modest tolerance.
    assert jnp.allclose(pi_d, ref_pid, atol=2e-2, rtol=2e-2)
    assert jnp.allclose(mean, ref_mean, atol=2e-2, rtol=2e-2)
    assert jnp.allclose(log_std, ref_ls, atol=2e-2, rtol=2e-2)

    print("KERNEL_OK")
</pallas_src>

<mosaic_0001>
module attributes {stable_mosaic.version = 11 : i64} {
  func.func @_actor_kernel(%arg0: i32, %arg1: memref<256x12xbf16, #tpu.memory_space<vmem>>, %arg2: memref<12x128xbf16, #tpu.memory_space<vmem>>, %arg3: memref<1x128xf32, #tpu.memory_space<vmem>>, %arg4: memref<128x128xbf16, #tpu.memory_space<vmem>>, %arg5: memref<1x128xf32, #tpu.memory_space<vmem>>, %arg6: memref<128x128xbf16, #tpu.memory_space<vmem>>, %arg7: memref<1x128xf32, #tpu.memory_space<vmem>>, %arg8: memref<256x128xf32, #tpu.memory_space<vmem>>) attributes {dimension_semantics = [#tpu.dimension_semantics<parallel>], iteration_bounds = array<i64: 1>, scalar_prefetch = 0 : i64, scratch_operands = 0 : i64, tpu.core_type = #tpu.core_type<tc>, window_params = [{transform_indices = @transform_0, window_bounds = array<i64: 256, 12>}, {pipeline_mode = #tpu.pipeline_mode<synchronous>, transform_indices = @transform_1, window_bounds = array<i64: 12, 128>}, {pipeline_mode = #tpu.pipeline_mode<synchronous>, transform_indices = @transform_2, window_bounds = array<i64: 1, 128>}, {pipeline_mode = #tpu.pipeline_mode<synchronous>, transform_indices = @transform_3, window_bounds = array<i64: 128, 128>}, {pipeline_mode = #tpu.pipeline_mode<synchronous>, transform_indices = @transform_4, window_bounds = array<i64: 1, 128>}, {pipeline_mode = #tpu.pipeline_mode<synchronous>, transform_indices = @transform_5, window_bounds = array<i64: 128, 128>}, {pipeline_mode = #tpu.pipeline_mode<synchronous>, transform_indices = @transform_6, window_bounds = array<i64: 1, 128>}, {transform_indices = @transform_7, window_bounds = array<i64: 256, 128>}]} {
    %c0 = arith.constant 0 : index
    %c0_0 = arith.constant 0 : index
    %0 = vector.load %arg1[%c0, %c0_0] : memref<256x12xbf16, #tpu.memory_space<vmem>>, vector<256x12xbf16>
    %c0_1 = arith.constant 0 : index
    %c0_2 = arith.constant 0 : index
    %1 = vector.load %arg2[%c0_1, %c0_2] : memref<12x128xbf16, #tpu.memory_space<vmem>>, vector<12x128xbf16>
    %cst = arith.constant dense<0.000000e+00> : vector<256x128xf32>
    %2 = tpu.matmul %0, %1, %cst {dimension_numbers = #tpu.dot_dimension_numbers<[1], [0], [0], [1], [0, 0, 1, 1], [], []>} : vector<256x12xbf16>, vector<12x128xbf16>, vector<256x128xf32> -> vector<256x128xf32>
    %c0_3 = arith.constant 0 : index
    %c0_4 = arith.constant 0 : index
    %3 = vector.load %arg3[%c0_3, %c0_4] : memref<1x128xf32, #tpu.memory_space<vmem>>, vector<1x128xf32>
    %4 = vector.broadcast %3 : vector<1x128xf32> to vector<256x128xf32>
    %5 = arith.addf %2, %4 : vector<256x128xf32>
    %cst_5 = arith.constant 0.000000e+00 : f32
    %6 = vector.broadcast %cst_5 : f32 to vector<256x128xf32>
    %7 = arith.maximumf %5, %6 : vector<256x128xf32>
    %8 = arith.truncf %7 : vector<256x128xf32> to vector<256x128xbf16>
    %c0_6 = arith.constant 0 : index
    %c0_7 = arith.constant 0 : index
    %9 = vector.load %arg4[%c0_6, %c0_7] : memref<128x128xbf16, #tpu.memory_space<vmem>>, vector<128x128xbf16>
    %cst_8 = arith.constant dense<0.000000e+00> : vector<256x128xf32>
    %10 = tpu.matmul %8, %9, %cst_8 {dimension_numbers = #tpu.dot_dimension_numbers<[1], [0], [0], [1], [0, 0, 1, 1], [], []>} : vector<256x128xbf16>, vector<128x128xbf16>, vector<256x128xf32> -> vector<256x128xf32>
    %c0_9 = arith.constant 0 : index
    %c0_10 = arith.constant 0 : index
    %11 = vector.load %arg5[%c0_9, %c0_10] : memref<1x128xf32, #tpu.memory_space<vmem>>, vector<1x128xf32>
    %12 = vector.broadcast %11 : vector<1x128xf32> to vector<256x128xf32>
    %13 = arith.addf %10, %12 : vector<256x128xf32>
    %cst_11 = arith.constant 0.000000e+00 : f32
    %14 = vector.broadcast %cst_11 : f32 to vector<256x128xf32>
    %15 = arith.maximumf %13, %14 : vector<256x128xf32>
    %16 = arith.truncf %15 : vector<256x128xf32> to vector<256x128xbf16>
    %c0_12 = arith.constant 0 : index
    %c0_13 = arith.constant 0 : index
    %17 = vector.load %arg6[%c0_12, %c0_13] : memref<128x128xbf16, #tpu.memory_space<vmem>>, vector<128x128xbf16>
    %cst_14 = arith.constant dense<0.000000e+00> : vector<256x128xf32>
    %18 = tpu.matmul %16, %17, %cst_14 {dimension_numbers = #tpu.dot_dimension_numbers<[1], [0], [0], [1], [0, 0, 1, 1], [], []>} : vector<256x128xbf16>, vector<128x128xbf16>, vector<256x128xf32> -> vector<256x128xf32>
    %c0_15 = arith.constant 0 : index
    %c0_16 = arith.constant 0 : index
    %19 = vector.load %arg7[%c0_15, %c0_16] : memref<1x128xf32, #tpu.memory_space<vmem>>, vector<1x128xf32>
    %20 = vector.broadcast %19 : vector<1x128xf32> to vector<256x128xf32>
    %21 = arith.addf %18, %20 : vector<256x128xf32>
    %22 = tpu.iota {dimensions = array<i32: 1>} : vector<256x128xi32>
    %c18_i32 = arith.constant 18 : i32
    %23 = vector.broadcast %c18_i32 : i32 to vector<256x128xi32>
    %24 = arith.cmpi sge, %22, %23 : vector<256x128xi32>
    %cst_17 = arith.constant -2.000000e+01 : f32
    %cst_18 = arith.constant 2.000000e+00 : f32
    %25 = vector.broadcast %cst_17 : f32 to vector<256x128xf32>
    %26 = arith.maximumf %25, %21 : vector<256x128xf32>
    %27 = vector.broadcast %cst_18 : f32 to vector<256x128xf32>
    %28 = arith.minimumf %27, %26 : vector<256x128xf32>
    %29 = arith.select %24, %28, %21 : vector<256x128xi1>, vector<256x128xf32>
    %c0_19 = arith.constant 0 : index
    %c0_20 = arith.constant 0 : index
    %30 = vector.load %arg8[%c0_19, %c0_20] : memref<256x128xf32, #tpu.memory_space<vmem>>, vector<256x128xf32>
    tpu.vector_store %arg8[%c0_19, %c0_20], %29 {strides = array<i32>} : memref<256x128xf32, #tpu.memory_space<vmem>>, vector<256x128xf32>,
    return
  }
  func.func @transform_0(%arg0: i32) -> (i32, i32) {
    %c0_i32 = arith.constant 0 : i32
    %c0_i32_0 = arith.constant 0 : i32
    return %arg0, %c0_i32 : i32, i32
  }
  func.func @transform_1(%arg0: i32) -> (i32, i32) {
    %c0_i32 = arith.constant 0 : i32
    %c0_i32_0 = arith.constant 0 : i32
    %c0_i32_1 = arith.constant 0 : i32
    return %c0_i32, %c0_i32_0 : i32, i32
  }
  func.func @transform_2(%arg0: i32) -> (i32, i32) {
    %c0_i32 = arith.constant 0 : i32
    %c0_i32_0 = arith.constant 0 : i32
    %c0_i32_1 = arith.constant 0 : i32
    return %c0_i32, %c0_i32_0 : i32, i32
  }
  func.func @transform_3(%arg0: i32) -> (i32, i32) {
    %c0_i32 = arith.constant 0 : i32
    %c0_i32_0 = arith.constant 0 : i32
    %c0_i32_1 = arith.constant 0 : i32
    return %c0_i32, %c0_i32_0 : i32, i32
  }
  func.func @transform_4(%arg0: i32) -> (i32, i32) {
    %c0_i32 = arith.constant 0 : i32
    %c0_i32_0 = arith.constant 0 : i32
    %c0_i32_1 = arith.constant 0 : i32
    return %c0_i32, %c0_i32_0 : i32, i32
  }
  func.func @transform_5(%arg0: i32) -> (i32, i32) {
    %c0_i32 = arith.constant 0 : i32
    %c0_i32_0 = arith.constant 0 : i32
    %c0_i32_1 = arith.constant 0 : i32
    return %c0_i32, %c0_i32_0 : i32, i32
  }
  func.func @transform_6(%arg0: i32) -> (i32, i32) {
    %c0_i32 = arith.constant 0 : i32
    %c0_i32_0 = arith.constant 0 : i32
    %c0_i32_1 = arith.constant 0 : i32
    return %c0_i32, %c0_i32_0 : i32, i32
  }
  func.func @transform_7(%arg0: i32) -> (i32, i32) {
    %c0_i32 = arith.constant 0 : i32
    %c0_i32_0 = arith.constant 0 : i32
    return %arg0, %c0_i32 : i32, i32
  }
}

</mosaic_0001>

<llo_original>
// kernel: _actor_padded_forward.1
$region0: #{_actor_padded_forward.1}
  #allocation0 [shape = 'u32[]', space=smem, size = 0x4, offset = 0x4, fixed_abs, tag = 'smem constant byte address 0x4 - core index']
  #allocation1 [shape = 'u32[144,128]{1,0:T(1,128)}', space=vmem, size = 0x12000, scoped, tag = 'internal scratch']
  %s0 = inlined_call_operand.vmem [shape: bf16[256,12], index: 0, kind: input, shape index: {}]
  %s1 = inlined_call_operand.vmem [shape: bf16[12,128], index: 1, kind: input, shape index: {}]
  %s2 = inlined_call_operand.vmem [shape: f32[1,128], index: 2, kind: input, shape index: {}]
  %s3 = inlined_call_operand.vmem [shape: bf16[128,128], index: 3, kind: input, shape index: {}]
  %s4 = inlined_call_operand.vmem [shape: f32[1,128], index: 4, kind: input, shape index: {}]
  %s5 = inlined_call_operand.vmem [shape: bf16[128,128], index: 5, kind: input, shape index: {}]
  %s6 = inlined_call_operand.vmem [shape: f32[1,128], index: 6, kind: input, shape index: {}]
  %s7 = inlined_call_operand.vmem [shape: f32[256,128], index: 7, kind: output, shape index: {}]
  %s8 = sld [smem:[#allocation0]]
  $region38: #{_actor_padded_forward.1} parent=0
    _
  %s10 = ssub.s32 1, %s8
  %s11 = scalar_select 0, %s10, %s8
  // Predicated region
  $region2: #{_actor_padded_forward.1} parent=0 // pred_check
    _
  $region3: #{_actor_padded_forward.1} parent=0 // pred_check_branch
    %13 = sbr.rel (0) target = $region5
  $region4: #{_actor_padded_forward.1} parent=0 // pred_region
    _
  $region5: #{_actor_padded_forward.1} parent=0 // pred_fallthru
    _
  // Predicated region
  $region6: #{_actor_padded_forward.1} parent=0 // pred_check
    _
  $region7: #{_actor_padded_forward.1} parent=0 // pred_check_branch
    %15 = sbr.rel (0) target = $region9
  $region8: #{_actor_padded_forward.1} parent=0 // pred_region
    _
  $region9: #{_actor_padded_forward.1} parent=0 // pred_fallthru
    _
  // Predicated region
  $region10: #{_actor_padded_forward.1} parent=0 // pred_check
    _
  $region11: #{_actor_padded_forward.1} parent=0 // pred_check_branch
    %17 = sbr.rel (0) target = $region13
  $region12: #{_actor_padded_forward.1} parent=0 // pred_region
    _
  $region13: #{_actor_padded_forward.1} parent=0 // pred_fallthru
    _
  // Predicated region
  $region14: #{_actor_padded_forward.1} parent=0 // pred_check
    _
  $region15: #{_actor_padded_forward.1} parent=0 // pred_check_branch
    %19 = sbr.rel (0) target = $region17
  $region16: #{_actor_padded_forward.1} parent=0 // pred_region
    _
  $region17: #{_actor_padded_forward.1} parent=0 // pred_fallthru
    _
  // Predicated region
  $region18: #{_actor_padded_forward.1} parent=0 // pred_check
    _
  $region19: #{_actor_padded_forward.1} parent=0 // pred_check_branch
    %21 = sbr.rel (0) target = $region21
  $region20: #{_actor_padded_forward.1} parent=0 // pred_region
    _
  $region21: #{_actor_padded_forward.1} parent=0 // pred_fallthru
    _
  // Predicated region
  $region22: #{_actor_padded_forward.1} parent=0 // pred_check
    _
  $region23: #{_actor_padded_forward.1} parent=0 // pred_check_branch
    %23 = sbr.rel (0) target = $region25
  $region24: #{_actor_padded_forward.1} parent=0 // pred_region
    _
  $region25: #{_actor_padded_forward.1} parent=0 // pred_fallthru
    _
  // Predicated region
  $region26: #{_actor_padded_forward.1} parent=0 // pred_check
    _
  $region27: #{_actor_padded_forward.1} parent=0 // pred_check_branch
    %25 = sbr.rel (0) target = $region29
  $region28: #{_actor_padded_forward.1} parent=0 // pred_region
    _
  $region29: #{_actor_padded_forward.1} parent=0 // pred_fallthru
    _
  %v27 = vld [vmem:[%s0] sm:$0xf]
  %v28 = vld [vmem:[%s0 + $0x4] sm:$0xf]
  %v29 = vld [vmem:[%s0 + $0x8] sm:$0xf]
  %v30 = vld [vmem:[%s0 + $0xc] sm:$0xf]
  %v31 = vld [vmem:[%s0 + $0x10] sm:$0xf]
  %v32 = vld [vmem:[%s0 + $0x14] sm:$0xf]
  %v33 = vld [vmem:[%s0 + $0x18] sm:$0xf]
  %v34 = vld [vmem:[%s0 + $0x1c] sm:$0xf]
  %v35 = vld [vmem:[%s0 + $0x20] sm:$0xf]
  %v36 = vld [vmem:[%s0 + $0x24] sm:$0xf]
  %v37 = vld [vmem:[%s0 + $0x28] sm:$0xf]
  %v38 = vld [vmem:[%s0 + $0x2c] sm:$0xf]
  %v39 = vld [vmem:[%s0 + $0x30] sm:$0xf]
  %v40 = vld [vmem:[%s0 + $0x34] sm:$0xf]
  %v41 = vld [vmem:[%s0 + $0x38] sm:$0xf]
  %v42 = vld [vmem:[%s0 + $0x3c] sm:$0xf]
  %v43 = vld [vmem:[%s0 + $0x40] sm:$0xf]
  %v44 = vld [vmem:[%s0 + $0x44] sm:$0xf]
  %v45 = vld [vmem:[%s0 + $0x48] sm:$0xf]
  %v46 = vld [vmem:[%s0 + $0x4c] sm:$0xf]
  %v47 = vld [vmem:[%s0 + $0x50] sm:$0xf]
  %v48 = vld [vmem:[%s0 + $0x54] sm:$0xf]
  %v49 = vld [vmem:[%s0 + $0x58] sm:$0xf]
  %v50 = vld [vmem:[%s0 + $0x5c] sm:$0xf]
  %v51 = vld [vmem:[%s0 + $0x60] sm:$0xf]
  %v52 = vld [vmem:[%s0 + $0x64] sm:$0xf]
  %v53 = vld [vmem:[%s0 + $0x68] sm:$0xf]
  %v54 = vld [vmem:[%s0 + $0x6c] sm:$0xf]
  %v55 = vld [vmem:[%s0 + $0x70] sm:$0xf]
  %v56 = vld [vmem:[%s0 + $0x74] sm:$0xf]
  %v57 = vld [vmem:[%s0 + $0x78] sm:$0xf]
  %v58 = vld [vmem:[%s0 + $0x7c] sm:$0xf]
  %v59 = vld [vmem:[%s1] sm:$0xf]
  %v60 = vld [vmem:[%s1 + $0x4] sm:$0x3]
  %v61 = vld [vmem:[%s2] sm:$0x1]
  %v63 = vlaneseq
  %v64 = vshrl.u32 %v63, 7
  %v65 = vsub.s32 0, %v64
  %v66 = vrot.slane %v61, %v65
  %v100 = vunpack.c.l.b16 %v27
  %v101 = vunpack.c.l.b16 %v28
  %v102 = vunpack.c.l.b16 %v29
  %v103 = vunpack.c.l.b16 %v30
  %v104 = vunpack.c.l.b16 %v31
  %v105 = vunpack.c.l.b16 %v32
  %v106 = vunpack.c.l.b16 %v33
  %v107 = vunpack.c.l.b16 %v34
  %v108 = vunpack.c.l.b16 %v35
  %v109 = vunpack.c.l.b16 %v36
  %v110 = vunpack.c.l.b16 %v37
  %v111 = vunpack.c.l.b16 %v38
  %v112 = vunpack.c.l.b16 %v39
  %v113 = vunpack.c.l.b16 %v40
  %v114 = vunpack.c.l.b16 %v41
  %v115 = vunpack.c.l.b16 %v42
  %v116 = vunpack.c.l.b16 %v43
  %v117 = vunpack.c.l.b16 %v44
  %v118 = vunpack.c.l.b16 %v45
  %v119 = vunpack.c.l.b16 %v46
  %v120 = vunpack.c.l.b16 %v47
  %v121 = vunpack.c.l.b16 %v48
  %v122 = vunpack.c.l.b16 %v49
  %v123 = vunpack.c.l.b16 %v50
  %v124 = vunpack.c.l.b16 %v51
  %v125 = vunpack.c.l.b16 %v52
  %v126 = vunpack.c.l.b16 %v53
  %v127 = vunpack.c.l.b16 %v54
  %v128 = vunpack.c.l.b16 %v55
  %v129 = vunpack.c.l.b16 %v56
  %v130 = vunpack.c.l.b16 %v57
  %v131 = vunpack.c.l.b16 %v58
  %v132 = vpack.c.b16 %v101, %v100
  %v133 = vpack.c.b16 %v103, %v102
  %v134 = vpack.c.b16 %v105, %v104
  %v135 = vpack.c.b16 %v107, %v106
  %v136 = vpack.c.b16 %v109, %v108
  %v137 = vpack.c.b16 %v111, %v110
  %v138 = vpack.c.b16 %v113, %v112
  %v139 = vpack.c.b16 %v115, %v114
  %v140 = vpack.c.b16 %v117, %v116
  %v141 = vpack.c.b16 %v119, %v118
  %v142 = vpack.c.b16 %v121, %v120
  %v143 = vpack.c.b16 %v123, %v122
  %v144 = vpack.c.b16 %v125, %v124
  %v145 = vpack.c.b16 %v127, %v126
  %v146 = vpack.c.b16 %v129, %v128
  %v147 = vpack.c.b16 %v131, %v130
  %v150 = vunpack.c.l.b16 %v59
  %v151 = vunpack.c.l.b16 %v60
  %v152 = vpack.c.b16 %v151, %v150
  %vm153 = vcmask 97280
  %v155 = vsel %vm153, %v132, 0
  %v158 = vsel %vm153, %v133, 0
  %v161 = vsel %vm153, %v134, 0
  %v164 = vsel %vm153, %v135, 0
  %v167 = vsel %vm153, %v136, 0
  %v170 = vsel %vm153, %v137, 0
  %v173 = vsel %vm153, %v138, 0
  %v176 = vsel %vm153, %v139, 0
  %v179 = vsel %vm153, %v140, 0
  %v182 = vsel %vm153, %v141, 0
  %v185 = vsel %vm153, %v142, 0
  %v188 = vsel %vm153, %v143, 0
  %v191 = vsel %vm153, %v144, 0
  %v194 = vsel %vm153, %v145, 0
  %v197 = vsel %vm153, %v146, 0
  %v200 = vsel %vm153, %v147, 0
  %vm202 = vcmask 1045504
  %v204 = vsel %vm202, %v152, 0
  %206 = vmatprep.subr.bf16.mxu0 0
  %207 = vmatpush1.bf16.msra.mxu0 0
  %208 = vmatprep.subr.bf16.mxu0 0
  %209 = vmatpush1.bf16.msra.mxu0 0
  %210 = vmatprep.subr.bf16.mxu0 0
  %211 = vmatpush1.bf16.msra.mxu0 0
  %212 = vmatprep.subr.bf16.mxu0 0
  %213 = vmatpush1.bf16.msra.mxu0 0
  %214 = vmatprep.subr.bf16.mxu0 0
  %215 = vmatpush1.bf16.msra.mxu0 0
  %216 = vmatprep.subr.bf16.mxu0 0
  %217 = vmatpush1.bf16.msra.mxu0 0
  %218 = vmatprep.subr.bf16.mxu0 0
  %219 = vmatpush1.bf16.msra.mxu0 0
  %220 = vmatprep.subr.bf16.mxu0 0
  %221 = vmatpush1.bf16.msra.mxu0 %v204
  %222 = vmatprep.subr.bf16.mxu0 0
  %223 = vmatpush2.bf16.msra.mxu0 0
  %224 = vmatprep.subr.bf16.mxu0 0
  %225 = vmatpush2.bf16.msra.mxu0 0
  %226 = vmatprep.subr.bf16.mxu0 0
  %227 = vmatpush2.bf16.msra.mxu0 0
  %228 = vmatprep.subr.bf16.mxu0 0
  %229 = vmatpush2.bf16.msra.mxu0 0
  %230 = vmatprep.subr.bf16.mxu0 0
  %231 = vmatpush2.bf16.msra.mxu0 0
  %232 = vmatprep.subr.bf16.mxu0 0
  %233 = vmatpush2.bf16.msra.mxu0 0
  %234 = vmatprep.subr.bf16.mxu0 0
  %235 = vmatpush2.bf16.msra.mxu0 0
  %236 = vmatprep.subr.bf16.mxu0 0
  %237 = vmatpush2.bf16.msra.mxu0 0
  %238 = vmatprep.mubr.bf16.mxu0 0
  %239 = vmatmul.mubr.bf16.gmra.mxu0 %v155
  %v240 = vpop.f32.mrf.mxu0
  %v241 = vadd.f32 %v66, %v240
  %v242 = vpop.f32.mrf.mxu0
  %v243 = vpop.f32.mrf.mxu0
  %v244 = vadd.f32 %v66, %v243
  %v245 = vpop.f32.mrf.mxu0
  %246 = vmatprep.mubr.bf16.mxu0 0
  %247 = vmatmul.mubr.bf16.gmra.mxu0 %v158
  %v248 = vpop.f32.mrf.mxu0
  %v249 = vadd.f32 %v66, %v248
  %v250 = vpop.f32.mrf.mxu0
  %v251 = vpop.f32.mrf.mxu0
  %v252 = vadd.f32 %v66, %v251
  %v253 = vpop.f32.mrf.mxu0
  %254 = vmatprep.mubr.bf16.mxu0 0
  %255 = vmatmul.mubr.bf16.gmra.mxu0 %v161
  %v256 = vpop.f32.mrf.mxu0
  %v257 = vadd.f32 %v66, %v256
  %v258 = vpop.f32.mrf.mxu0
  %v259 = vpop.f32.mrf.mxu0
  %v260 = vadd.f32 %v66, %v259
  %v261 = vpop.f32.mrf.mxu0
  %262 = vmatprep.mubr.bf16.mxu0 0
  %263 = vmatmul.mubr.bf16.gmra.mxu0 %v164
  %v264 = vpop.f32.mrf.mxu0
  %v265 = vadd.f32 %v66, %v264
  %v266 = vpop.f32.mrf.mxu0
  %v267 = vpop.f32.mrf.mxu0
  %v268 = vadd.f32 %v66, %v267
  %v269 = vpop.f32.mrf.mxu0
  %270 = vmatprep.mubr.bf16.mxu0 0
  %271 = vmatmul.mubr.bf16.gmra.mxu0 %v167
  %v272 = vpop.f32.mrf.mxu0
  %v273 = vadd.f32 %v66, %v272
  %v274 = vpop.f32.mrf.mxu0
  %v275 = vpop.f32.mrf.mxu0
  %v276 = vadd.f32 %v66, %v275
  %v277 = vpop.f32.mrf.mxu0
  %278 = vmatprep.mubr.bf16.mxu0 0
  %279 = vmatmul.mubr.bf16.gmra.mxu0 %v170
  %v280 = vpop.f32.mrf.mxu0
  %v281 = vadd.f32 %v66, %v280
  %v282 = vpop.f32.mrf.mxu0
  %v283 = vpop.f32.mrf.mxu0
  %v284 = vadd.f32 %v66, %v283
  %v285 = vpop.f32.mrf.mxu0
  %286 = vmatprep.mubr.bf16.mxu0 0
  %287 = vmatmul.mubr.bf16.gmra.mxu0 %v173
  %v288 = vpop.f32.mrf.mxu0
  %v289 = vadd.f32 %v66, %v288
  %v290 = vpop.f32.mrf.mxu0
  %v291 = vpop.f32.mrf.mxu0
  %v292 = vadd.f32 %v66, %v291
  %v293 = vpop.f32.mrf.mxu0
  %294 = vmatprep.mubr.bf16.mxu0 0
  %295 = vmatmul.mubr.bf16.gmra.mxu0 %v176
  %v296 = vpop.f32.mrf.mxu0
  %v297 = vadd.f32 %v66, %v296
  %v298 = vpop.f32.mrf.mxu0
  %v299 = vpop.f32.mrf.mxu0
  %v300 = vadd.f32 %v66, %v299
  %v301 = vpop.f32.mrf.mxu0
  %302 = vmatprep.mubr.bf16.mxu0 0
  %303 = vmatmul.mubr.bf16.gmra.mxu0 %v179
  %v304 = vpop.f32.mrf.mxu0
  %v305 = vadd.f32 %v66, %v304
  %v306 = vpop.f32.mrf.mxu0
  %v307 = vpop.f32.mrf.mxu0
  %v308 = vadd.f32 %v66, %v307
  %v309 = vpop.f32.mrf.mxu0
  %310 = vmatprep.mubr.bf16.mxu0 0
  %311 = vmatmul.mubr.bf16.gmra.mxu0 %v182
  %v312 = vpop.f32.mrf.mxu0
  %v313 = vadd.f32 %v66, %v312
  %v314 = vpop.f32.mrf.mxu0
  %v315 = vpop.f32.mrf.mxu0
  %v316 = vadd.f32 %v66, %v315
  %v317 = vpop.f32.mrf.mxu0
  %318 = vmatprep.mubr.bf16.mxu0 0
  %319 = vmatmul.mubr.bf16.gmra.mxu0 %v185
  %v320 = vpop.f32.mrf.mxu0
  %v321 = vadd.f32 %v66, %v320
  %v322 = vpop.f32.mrf.mxu0
  %v323 = vpop.f32.mrf.mxu0
  %v324 = vadd.f32 %v66, %v323
  %v325 = vpop.f32.mrf.mxu0
  %326 = vmatprep.mubr.bf16.mxu0 0
  %327 = vmatmul.mubr.bf16.gmra.mxu0 %v188
  %v328 = vpop.f32.mrf.mxu0
  %v329 = vadd.f32 %v66, %v328
  %v330 = vpop.f32.mrf.mxu0
  %v331 = vpop.f32.mrf.mxu0
  %v332 = vadd.f32 %v66, %v331
  %v333 = vpop.f32.mrf.mxu0
  %334 = vmatprep.mubr.bf16.mxu0 0
  %335 = vmatmul.mubr.bf16.gmra.mxu0 %v191
  %v336 = vpop.f32.mrf.mxu0
  %v337 = vadd.f32 %v66, %v336
  %v338 = vpop.f32.mrf.mxu0
  %v339 = vpop.f32.mrf.mxu0
  %v340 = vadd.f32 %v66, %v339
  %v341 = vpop.f32.mrf.mxu0
  %342 = vmatprep.mubr.bf16.mxu0 0
  %343 = vmatmul.mubr.bf16.gmra.mxu0 %v194
  %v344 = vpop.f32.mrf.mxu0
  %v345 = vadd.f32 %v66, %v344
  %v346 = vpop.f32.mrf.mxu0
  %v347 = vpop.f32.mrf.mxu0
  %v348 = vadd.f32 %v66, %v347
  %v349 = vpop.f32.mrf.mxu0
  %350 = vmatprep.mubr.bf16.mxu0 0
  %351 = vmatmul.mubr.bf16.gmra.mxu0 %v197
  %v352 = vpop.f32.mrf.mxu0
  %v353 = vadd.f32 %v66, %v352
  %v354 = vpop.f32.mrf.mxu0
  %v355 = vpop.f32.mrf.mxu0
  %v356 = vadd.f32 %v66, %v355
  %v357 = vpop.f32.mrf.mxu0
  %358 = vmatprep.mubr.bf16.mxu0 0
  %359 = vmatmul.mubr.bf16.gmra.mxu0 %v200
  %v360 = vpop.f32.mrf.mxu0
  %v361 = vadd.f32 %v66, %v360
  %v362 = vpop.f32.mrf.mxu0
  %v363 = vpop.f32.mrf.mxu0
  %v364 = vadd.f32 %v66, %v363
  %v365 = vpop.f32.mrf.mxu0
  %366 = vdwg.mxu0
  %v367 = vmax.f32 %v241, 0.0
  %v368 = vmax.f32 %v244, 0.0
  %v369 = vmax.f32 %v249, 0.0
  %v370 = vmax.f32 %v252, 0.0
  %v371 = vmax.f32 %v257, 0.0
  %v372 = vmax.f32 %v260, 0.0
  %v373 = vmax.f32 %v265, 0.0
  %v374 = vmax.f32 %v268, 0.0
  %v375 = vmax.f32 %v273, 0.0
  %v376 = vmax.f32 %v276, 0.0
  %v377 = vmax.f32 %v281, 0.0
  %v378 = vmax.f32 %v284, 0.0
  %v379 = vmax.f32 %v289, 0.0
  %v380 = vmax.f32 %v292, 0.0
  %v381 = vmax.f32 %v297, 0.0
  %v382 = vmax.f32 %v300, 0.0
  %v383 = vmax.f32 %v305, 0.0
  %v384 = vmax.f32 %v308, 0.0
  %v385 = vmax.f32 %v313, 0.0
  %v386 = vmax.f32 %v316, 0.0
  %v387 = vmax.f32 %v321, 0.0
  %v388 = vmax.f32 %v324, 0.0
  %v389 = vmax.f32 %v329, 0.0
  %v390 = vmax.f32 %v332, 0.0
  %v391 = vmax.f32 %v337, 0.0
  %v392 = vmax.f32 %v340, 0.0
  %v393 = vmax.f32 %v345, 0.0
  %v394 = vmax.f32 %v348, 0.0
  %v395 = vmax.f32 %v353, 0.0
  %v396 = vmax.f32 %v356, 0.0
  %v397 = vmax.f32 %v361, 0.0
  %v398 = vmax.f32 %v364, 0.0
  %v399 = vpack.c.bf16 %v368, %v367
  %v400 = vpack.c.bf16 %v370, %v369
  %v401 = vpack.c.bf16 %v372, %v371
  %v402 = vpack.c.bf16 %v374, %v373
  %v403 = vpack.c.bf16 %v376, %v375
  %v404 = vpack.c.bf16 %v378, %v377
  %v405 = vpack.c.bf16 %v380, %v379
  %v406 = vpack.c.bf16 %v382, %v381
  %v407 = vpack.c.bf16 %v384, %v383
  %v408 = vpack.c.bf16 %v386, %v385
  %v409 = vpack.c.bf16 %v388, %v387
  %v410 = vpack.c.bf16 %v390, %v389
  %v411 = vpack.c.bf16 %v392, %v391
  %v412 = vpack.c.bf16 %v394, %v393
  %v413 = vpack.c.bf16 %v396, %v395
  %v414 = vpack.c.bf16 %v398, %v397
  %v415 = vld [vmem:[%s3] sm:$0xf]
  %v416 = vld [vmem:[%s3 + $0x4] sm:$0xf]
  %v417 = vld [vmem:[%s3 + $0x8] sm:$0xf]
  %v418 = vld [vmem:[%s3 + $0xc] sm:$0xf]
  %v419 = vld [vmem:[%s3 + $0x10] sm:$0xf]
  %v420 = vld [vmem:[%s3 + $0x14] sm:$0xf]
  %v421 = vld [vmem:[%s3 + $0x18] sm:$0xf]
  %v422 = vld [vmem:[%s3 + $0x1c] sm:$0xf]
  %v423 = vld [vmem:[%s3 + $0x20] sm:$0xf]
  %v424 = vld [vmem:[%s3 + $0x24] sm:$0xf]
  %v425 = vld [vmem:[%s3 + $0x28] sm:$0xf]
  %v426 = vld [vmem:[%s3 + $0x2c] sm:$0xf]
  %v427 = vld [vmem:[%s3 + $0x30] sm:$0xf]
  %v428 = vld [vmem:[%s3 + $0x34] sm:$0xf]
  %v429 = vld [vmem:[%s3 + $0x38] sm:$0xf]
  %v430 = vld [vmem:[%s3 + $0x3c] sm:$0xf]
  %v431 = vld [vmem:[%s4] sm:$0x1]
  %v433 = vlaneseq
  %v434 = vshrl.u32 %v433, 7
  %v435 = vsub.s32 0, %v434
  %v436 = vrot.slane %v431, %v435
  %v454 = vunpack.c.l.b16 %v415
  %v455 = vunpack.c.l.b16 %v416
  %v456 = vunpack.c.l.b16 %v417
  %v457 = vunpack.c.l.b16 %v418
  %v458 = vunpack.c.l.b16 %v419
  %v459 = vunpack.c.l.b16 %v420
  %v460 = vunpack.c.l.b16 %v421
  %v461 = vunpack.c.l.b16 %v422
  %v462 = vunpack.c.l.b16 %v423
  %v463 = vunpack.c.l.b16 %v424
  %v464 = vunpack.c.l.b16 %v425
  %v465 = vunpack.c.l.b16 %v426
  %v466 = vunpack.c.l.b16 %v427
  %v467 = vunpack.c.l.b16 %v428
  %v468 = vunpack.c.l.b16 %v429
  %v469 = vunpack.c.l.b16 %v430
  %v470 = vpack.c.b16 %v455, %v454
  %v471 = vpack.c.b16 %v457, %v456
  %v472 = vpack.c.b16 %v459, %v458
  %v473 = vpack.c.b16 %v461, %v460
  %v474 = vpack.c.b16 %v463, %v462
  %v475 = vpack.c.b16 %v465, %v464
  %v476 = vpack.c.b16 %v467, %v466
  %v477 = vpack.c.b16 %v469, %v468
  %486 = vmatprep.subr.bf16.mxu0 0
  %487 = vmatpush1.bf16.msra.mxu0 %v477
  %488 = vmatprep.subr.bf16.mxu0 0
  %489 = vmatpush1.bf16.msra.mxu0 %v476
  %490 = vmatprep.subr.bf16.mxu0 0
  %491 = vmatpush1.bf16.msra.mxu0 %v475
  %492 = vmatprep.subr.bf16.mxu0 0
  %493 = vmatpush1.bf16.msra.mxu0 %v474
  %494 = vmatprep.subr.bf16.mxu0 0
  %495 = vmatpush1.bf16.msra.mxu0 %v473
  %496 = vmatprep.subr.bf16.mxu0 0
  %497 = vmatpush1.bf16.msra.mxu0 %v472
  %498 = vmatprep.subr.bf16.mxu0 0
  %499 = vmatpush1.bf16.msra.mxu0 %v471
  %500 = vmatprep.subr.bf16.mxu0 0
  %501 = vmatpush1.bf16.msra.mxu0 %v470
  %502 = vmatprep.subr.bf16.mxu0 0
  %503 = vmatpush2.bf16.msra.mxu0 0
  %504 = vmatprep.subr.bf16.mxu0 0
  %505 = vmatpush2.bf16.msra.mxu0 0
  %506 = vmatprep.subr.bf16.mxu0 0
  %507 = vmatpush2.bf16.msra.mxu0 0
  %508 = vmatprep.subr.bf16.mxu0 0
  %509 = vmatpush2.bf16.msra.mxu0 0
  %510 = vmatprep.subr.bf16.mxu0 0
  %511 = vmatpush2.bf16.msra.mxu0 0
  %512 = vmatprep.subr.bf16.mxu0 0
  %513 = vmatpush2.bf16.msra.mxu0 0
  %514 = vmatprep.subr.bf16.mxu0 0
  %515 = vmatpush2.bf16.msra.mxu0 0
  %516 = vmatprep.subr.bf16.mxu0 0
  %517 = vmatpush2.bf16.msra.mxu0 0
  %518 = vmatprep.mubr.bf16.mxu0 0
  %519 = vmatmul.mubr.bf16.gmra.mxu0 %v399
  %v520 = vpop.f32.mrf.mxu0
  %v521 = vadd.f32 %v436, %v520
  %v522 = vpop.f32.mrf.mxu0
  %v523 = vpop.f32.mrf.mxu0
  %v524 = vadd.f32 %v436, %v523
  %v525 = vpop.f32.mrf.mxu0
  %526 = vmatprep.mubr.bf16.mxu0 0
  %527 = vmatmul.mubr.bf16.gmra.mxu0 %v400
  %v528 = vpop.f32.mrf.mxu0
  %v529 = vadd.f32 %v436, %v528
  %v530 = vpop.f32.mrf.mxu0
  %v531 = vpop.f32.mrf.mxu0
  %v532 = vadd.f32 %v436, %v531
  %v533 = vpop.f32.mrf.mxu0
  %534 = vmatprep.mubr.bf16.mxu0 0
  %535 = vmatmul.mubr.bf16.gmra.mxu0 %v401
  %v536 = vpop.f32.mrf.mxu0
  %v537 = vadd.f32 %v436, %v536
  %v538 = vpop.f32.mrf.mxu0
  %v539 = vpop.f32.mrf.mxu0
  %v540 = vadd.f32 %v436, %v539
  %v541 = vpop.f32.mrf.mxu0
  %542 = vmatprep.mubr.bf16.mxu0 0
  %543 = vmatmul.mubr.bf16.gmra.mxu0 %v402
  %v544 = vpop.f32.mrf.mxu0
  %v545 = vadd.f32 %v436, %v544
  %v546 = vpop.f32.mrf.mxu0
  %v547 = vpop.f32.mrf.mxu0
  %v548 = vadd.f32 %v436, %v547
  %v549 = vpop.f32.mrf.mxu0
  %550 = vmatprep.mubr.bf16.mxu0 0
  %551 = vmatmul.mubr.bf16.gmra.mxu0 %v403
  %v552 = vpop.f32.mrf.mxu0
  %v553 = vadd.f32 %v436, %v552
  %v554 = vpop.f32.mrf.mxu0
  %v555 = vpop.f32.mrf.mxu0
  %v556 = vadd.f32 %v436, %v555
  %v557 = vpop.f32.mrf.mxu0
  %558 = vmatprep.mubr.bf16.mxu0 0
  %559 = vmatmul.mubr.bf16.gmra.mxu0 %v404
  %v560 = vpop.f32.mrf.mxu0
  %v561 = vadd.f32 %v436, %v560
  %v562 = vpop.f32.mrf.mxu0
  %v563 = vpop.f32.mrf.mxu0
  %v564 = vadd.f32 %v436, %v563
  %v565 = vpop.f32.mrf.mxu0
  %566 = vmatprep.mubr.bf16.mxu0 0
  %567 = vmatmul.mubr.bf16.gmra.mxu0 %v405
  %v568 = vpop.f32.mrf.mxu0
  %v569 = vadd.f32 %v436, %v568
  %v570 = vpop.f32.mrf.mxu0
  %v571 = vpop.f32.mrf.mxu0
  %v572 = vadd.f32 %v436, %v571
  %v573 = vpop.f32.mrf.mxu0
  %574 = vmatprep.mubr.bf16.mxu0 0
  %575 = vmatmul.mubr.bf16.gmra.mxu0 %v406
  %v576 = vpop.f32.mrf.mxu0
  %v577 = vadd.f32 %v436, %v576
  %v578 = vpop.f32.mrf.mxu0
  %v579 = vpop.f32.mrf.mxu0
  %v580 = vadd.f32 %v436, %v579
  %v581 = vpop.f32.mrf.mxu0
  %582 = vmatprep.mubr.bf16.mxu0 0
  %583 = vmatmul.mubr.bf16.gmra.mxu0 %v407
  %v584 = vpop.f32.mrf.mxu0
  %v585 = vadd.f32 %v436, %v584
  %v586 = vpop.f32.mrf.mxu0
  %v587 = vpop.f32.mrf.mxu0
  %v588 = vadd.f32 %v436, %v587
  %v589 = vpop.f32.mrf.mxu0
  %590 = vmatprep.mubr.bf16.mxu0 0
  %591 = vmatmul.mubr.bf16.gmra.mxu0 %v408
  %v592 = vpop.f32.mrf.mxu0
  %v593 = vadd.f32 %v436, %v592
  %v594 = vpop.f32.mrf.mxu0
  %v595 = vpop.f32.mrf.mxu0
  %v596 = vadd.f32 %v436, %v595
  %v597 = vpop.f32.mrf.mxu0
  %598 = vmatprep.mubr.bf16.mxu0 0
  %599 = vmatmul.mubr.bf16.gmra.mxu0 %v409
  %v600 = vpop.f32.mrf.mxu0
  %v601 = vadd.f32 %v436, %v600
  %v602 = vpop.f32.mrf.mxu0
  %v603 = vpop.f32.mrf.mxu0
  %v604 = vadd.f32 %v436, %v603
  %v605 = vpop.f32.mrf.mxu0
  %606 = vmatprep.mubr.bf16.mxu0 0
  %607 = vmatmul.mubr.bf16.gmra.mxu0 %v410
  %v608 = vpop.f32.mrf.mxu0
  %v609 = vadd.f32 %v436, %v608
  %v610 = vpop.f32.mrf.mxu0
  %v611 = vpop.f32.mrf.mxu0
  %v612 = vadd.f32 %v436, %v611
  %v613 = vpop.f32.mrf.mxu0
  %614 = vmatprep.mubr.bf16.mxu0 0
  %615 = vmatmul.mubr.bf16.gmra.mxu0 %v411
  %v616 = vpop.f32.mrf.mxu0
  %v617 = vadd.f32 %v436, %v616
  %v618 = vpop.f32.mrf.mxu0
  %v619 = vpop.f32.mrf.mxu0
  %v620 = vadd.f32 %v436, %v619
  %v621 = vpop.f32.mrf.mxu0
  %622 = vmatprep.mubr.bf16.mxu0 0
  %623 = vmatmul.mubr.bf16.gmra.mxu0 %v412
  %v624 = vpop.f32.mrf.mxu0
  %v625 = vadd.f32 %v436, %v624
  %v626 = vpop.f32.mrf.mxu0
  %v627 = vpop.f32.mrf.mxu0
  %v628 = vadd.f32 %v436, %v627
  %v629 = vpop.f32.mrf.mxu0
  %630 = vmatprep.mubr.bf16.mxu0 0
  %631 = vmatmul.mubr.bf16.gmra.mxu0 %v413
  %v632 = vpop.f32.mrf.mxu0
  %v633 = vadd.f32 %v436, %v632
  %v634 = vpop.f32.mrf.mxu0
  %v635 = vpop.f32.mrf.mxu0
  %v636 = vadd.f32 %v436, %v635
  %v637 = vpop.f32.mrf.mxu0
  %638 = vmatprep.mubr.bf16.mxu0 0
  %639 = vmatmul.mubr.bf16.gmra.mxu0 %v414
  %v640 = vpop.f32.mrf.mxu0
  %v641 = vadd.f32 %v436, %v640
  %v642 = vpop.f32.mrf.mxu0
  %v643 = vpop.f32.mrf.mxu0
  %v644 = vadd.f32 %v436, %v643
  %v645 = vpop.f32.mrf.mxu0
  %646 = vdwg.mxu0
  %v647 = vmax.f32 %v521, 0.0
  %v648 = vmax.f32 %v524, 0.0
  %v649 = vmax.f32 %v529, 0.0
  %v650 = vmax.f32 %v532, 0.0
  %v651 = vmax.f32 %v537, 0.0
  %v652 = vmax.f32 %v540, 0.0
  %v653 = vmax.f32 %v545, 0.0
  %v654 = vmax.f32 %v548, 0.0
  %v655 = vmax.f32 %v553, 0.0
  %v656 = vmax.f32 %v556, 0.0
  %v657 = vmax.f32 %v561, 0.0
  %v658 = vmax.f32 %v564, 0.0
  %v659 = vmax.f32 %v569, 0.0
  %v660 = vmax.f32 %v572, 0.0
  %v661 = vmax.f32 %v577, 0.0
  %v662 = vmax.f32 %v580, 0.0
  %v663 = vmax.f32 %v585, 0.0
  %v664 = vmax.f32 %v588, 0.0
  %v665 = vmax.f32 %v593, 0.0
  %v666 = vmax.f32 %v596, 0.0
  %v667 = vmax.f32 %v601, 0.0
  %v668 = vmax.f32 %v604, 0.0
  %v669 = vmax.f32 %v609, 0.0
  %v670 = vmax.f32 %v612, 0.0
  %v671 = vmax.f32 %v617, 0.0
  %v672 = vmax.f32 %v620, 0.0
  %v673 = vmax.f32 %v625, 0.0
  %v674 = vmax.f32 %v628, 0.0
  %v675 = vmax.f32 %v633, 0.0
  %v676 = vmax.f32 %v636, 0.0
  %v677 = vmax.f32 %v641, 0.0
  %v678 = vmax.f32 %v644, 0.0
  %v679 = vpack.c.bf16 %v648, %v647
  %v680 = vpack.c.bf16 %v650, %v649
  %v681 = vpack.c.bf16 %v652, %v651
  %v682 = vpack.c.bf16 %v654, %v653
  %v683 = vpack.c.bf16 %v656, %v655
  %v684 = vpack.c.bf16 %v658, %v657
  %v685 = vpack.c.bf16 %v660, %v659
  %v686 = vpack.c.bf16 %v662, %v661
  %v687 = vpack.c.bf16 %v664, %v663
  %v688 = vpack.c.bf16 %v666, %v665
  %v689 = vpack.c.bf16 %v668, %v667
  %v690 = vpack.c.bf16 %v670, %v669
  %v691 = vpack.c.bf16 %v672, %v671
  %v692 = vpack.c.bf16 %v674, %v673
  %v693 = vpack.c.bf16 %v676, %v675
  %v694 = vpack.c.bf16 %v678, %v677
  %v695 = vld [vmem:[%s5] sm:$0xf]
  %v696 = vld [vmem:[%s5 + $0x4] sm:$0xf]
  %v697 = vld [vmem:[%s5 + $0x8] sm:$0xf]
  %v698 = vld [vmem:[%s5 + $0xc] sm:$0xf]
  %v699 = vld [vmem:[%s5 + $0x10] sm:$0xf]
  %v700 = vld [vmem:[%s5 + $0x14] sm:$0xf]
  %v701 = vld [vmem:[%s5 + $0x18] sm:$0xf]
  %v702 = vld [vmem:[%s5 + $0x1c] sm:$0xf]
  %v703 = vld [vmem:[%s5 + $0x20] sm:$0xf]
  %v704 = vld [vmem:[%s5 + $0x24] sm:$0xf]
  %v705 = vld [vmem:[%s5 + $0x28] sm:$0xf]
  %v706 = vld [vmem:[%s5 + $0x2c] sm:$0xf]
  %v707 = vld [vmem:[%s5 + $0x30] sm:$0xf]
  %v708 = vld [vmem:[%s5 + $0x34] sm:$0xf]
  %v709 = vld [vmem:[%s5 + $0x38] sm:$0xf]
  %v710 = vld [vmem:[%s5 + $0x3c] sm:$0xf]
  %v711 = vld [vmem:[%s6] sm:$0x1]
  %v713 = vlaneseq
  %v714 = vshrl.u32 %v713, 7
  %v715 = vsub.s32 0, %v714
  %v716 = vrot.slane %v711, %v715
  %v734 = vunpack.c.l.b16 %v695
  %v735 = vunpack.c.l.b16 %v696
  %v736 = vunpack.c.l.b16 %v697
  %v737 = vunpack.c.l.b16 %v698
  %v738 = vunpack.c.l.b16 %v699
  %v739 = vunpack.c.l.b16 %v700
  %v740 = vunpack.c.l.b16 %v701
  %v741 = vunpack.c.l.b16 %v702
  %v742 = vunpack.c.l.b16 %v703
  %v743 = vunpack.c.l.b16 %v704
  %v744 = vunpack.c.l.b16 %v705
  %v745 = vunpack.c.l.b16 %v706
  %v746 = vunpack.c.l.b16 %v707
  %v747 = vunpack.c.l.b16 %v708
  %v748 = vunpack.c.l.b16 %v709
  %v749 = vunpack.c.l.b16 %v710
  %v750 = vpack.c.b16 %v735, %v734
  %v751 = vpack.c.b16 %v737, %v736
  %v752 = vpack.c.b16 %v739, %v738
  %v753 = vpack.c.b16 %v741, %v740
  %v754 = vpack.c.b16 %v743, %v742
  %v755 = vpack.c.b16 %v745, %v744
  %v756 = vpack.c.b16 %v747, %v746
  %v757 = vpack.c.b16 %v749, %v748
  %766 = vmatprep.subr.bf16.mxu0 0
  %767 = vmatpush1.bf16.msra.mxu0 %v757
  %768 = vmatprep.subr.bf16.mxu0 0
  %769 = vmatpush1.bf16.msra.mxu0 %v756
  %770 = vmatprep.subr.bf16.mxu0 0
  %771 = vmatpush1.bf16.msra.mxu0 %v755
  %772 = vmatprep.subr.bf16.mxu0 0
  %773 = vmatpush1.bf16.msra.mxu0 %v754
  %774 = vmatprep.subr.bf16.mxu0 0
  %775 = vmatpush1.bf16.msra.mxu0 %v753
  %776 = vmatprep.subr.bf16.mxu0 0
  %777 = vmatpush1.bf16.msra.mxu0 %v752
  %778 = vmatprep.subr.bf16.mxu0 0
  %779 = vmatpush1.bf16.msra.mxu0 %v751
  %780 = vmatprep.subr.bf16.mxu0 0
  %781 = vmatpush1.bf16.msra.mxu0 %v750
  %782 = vmatprep.subr.bf16.mxu0 0
  %783 = vmatpush2.bf16.msra.mxu0 0
  %784 = vmatprep.subr.bf16.mxu0 0
  %785 = vmatpush2.bf16.msra.mxu0 0
  %786 = vmatprep.subr.bf16.mxu0 0
  %787 = vmatpush2.bf16.msra.mxu0 0
  %788 = vmatprep.subr.bf16.mxu0 0
  %789 = vmatpush2.bf16.msra.mxu0 0
  %790 = vmatprep.subr.bf16.mxu0 0
  %791 = vmatpush2.bf16.msra.mxu0 0
  %792 = vmatprep.subr.bf16.mxu0 0
  %793 = vmatpush2.bf16.msra.mxu0 0
  %794 = vmatprep.subr.bf16.mxu0 0
  %795 = vmatpush2.bf16.msra.mxu0 0
  %796 = vmatprep.subr.bf16.mxu0 0
  %797 = vmatpush2.bf16.msra.mxu0 0
  %798 = vmatprep.mubr.bf16.mxu0 0
  %799 = vmatmul.mubr.bf16.gmra.mxu0 %v679
  %v800 = vpop.f32.mrf.mxu0
  %v801 = vadd.f32 %v716, %v800
  %v802 = vpop.f32.mrf.mxu0
  %v803 = vpop.f32.mrf.mxu0
  %v804 = vadd.f32 %v716, %v803
  %v805 = vpop.f32.mrf.mxu0
  %806 = vmatprep.mubr.bf16.mxu0 0
  %807 = vmatmul.mubr.bf16.gmra.mxu0 %v680
  %v808 = vpop.f32.mrf.mxu0
  %v809 = vadd.f32 %v716, %v808
  %v810 = vpop.f32.mrf.mxu0
  %v811 = vpop.f32.mrf.mxu0
  %v812 = vadd.f32 %v716, %v811
  %v813 = vpop.f32.mrf.mxu0
  %814 = vmatprep.mubr.bf16.mxu0 0
  %815 = vmatmul.mubr.bf16.gmra.mxu0 %v681
  %v816 = vpop.f32.mrf.mxu0
  %v817 = vadd.f32 %v716, %v816
  %v818 = vpop.f32.mrf.mxu0
  %v819 = vpop.f32.mrf.mxu0
  %v820 = vadd.f32 %v716, %v819
  %v821 = vpop.f32.mrf.mxu0
  %822 = vmatprep.mubr.bf16.mxu0 0
  %823 = vmatmul.mubr.bf16.gmra.mxu0 %v682
  %v824 = vpop.f32.mrf.mxu0
  %v825 = vadd.f32 %v716, %v824
  %v826 = vpop.f32.mrf.mxu0
  %v827 = vpop.f32.mrf.mxu0
  %v828 = vadd.f32 %v716, %v827
  %v829 = vpop.f32.mrf.mxu0
  %830 = vmatprep.mubr.bf16.mxu0 0
  %831 = vmatmul.mubr.bf16.gmra.mxu0 %v683
  %v832 = vpop.f32.mrf.mxu0
  %v833 = vadd.f32 %v716, %v832
  %v834 = vpop.f32.mrf.mxu0
  %v835 = vpop.f32.mrf.mxu0
  %v836 = vadd.f32 %v716, %v835
  %v837 = vpop.f32.mrf.mxu0
  %838 = vmatprep.mubr.bf16.mxu0 0
  %839 = vmatmul.mubr.bf16.gmra.mxu0 %v684
  %v840 = vpop.f32.mrf.mxu0
  %v841 = vadd.f32 %v716, %v840
  %v842 = vpop.f32.mrf.mxu0
  %v843 = vpop.f32.mrf.mxu0
  %v844 = vadd.f32 %v716, %v843
  %v845 = vpop.f32.mrf.mxu0
  %846 = vmatprep.mubr.bf16.mxu0 0
  %847 = vmatmul.mubr.bf16.gmra.mxu0 %v685
  %v848 = vpop.f32.mrf.mxu0
  %v849 = vadd.f32 %v716, %v848
  %v850 = vpop.f32.mrf.mxu0
  %v851 = vpop.f32.mrf.mxu0
  %v852 = vadd.f32 %v716, %v851
  %v853 = vpop.f32.mrf.mxu0
  %854 = vmatprep.mubr.bf16.mxu0 0
  %855 = vmatmul.mubr.bf16.gmra.mxu0 %v686
  %v856 = vpop.f32.mrf.mxu0
  %v857 = vadd.f32 %v716, %v856
  %v858 = vpop.f32.mrf.mxu0
  %v859 = vpop.f32.mrf.mxu0
  %v860 = vadd.f32 %v716, %v859
  %v861 = vpop.f32.mrf.mxu0
  %862 = vmatprep.mubr.bf16.mxu0 0
  %863 = vmatmul.mubr.bf16.gmra.mxu0 %v687
  %v864 = vpop.f32.mrf.mxu0
  %v865 = vadd.f32 %v716, %v864
  %v866 = vpop.f32.mrf.mxu0
  %v867 = vpop.f32.mrf.mxu0
  %v868 = vadd.f32 %v716, %v867
  %v869 = vpop.f32.mrf.mxu0
  %870 = vmatprep.mubr.bf16.mxu0 0
  %871 = vmatmul.mubr.bf16.gmra.mxu0 %v688
  %v872 = vpop.f32.mrf.mxu0
  %v873 = vadd.f32 %v716, %v872
  %v874 = vpop.f32.mrf.mxu0
  %v875 = vpop.f32.mrf.mxu0
  %v876 = vadd.f32 %v716, %v875
  %v877 = vpop.f32.mrf.mxu0
  %878 = vmatprep.mubr.bf16.mxu0 0
  %879 = vmatmul.mubr.bf16.gmra.mxu0 %v689
  %v880 = vpop.f32.mrf.mxu0
  %v881 = vadd.f32 %v716, %v880
  %v882 = vpop.f32.mrf.mxu0
  %v883 = vpop.f32.mrf.mxu0
  %v884 = vadd.f32 %v716, %v883
  %v885 = vpop.f32.mrf.mxu0
  %886 = vmatprep.mubr.bf16.mxu0 0
  %887 = vmatmul.mubr.bf16.gmra.mxu0 %v690
  %v888 = vpop.f32.mrf.mxu0
  %v889 = vadd.f32 %v716, %v888
  %v890 = vpop.f32.mrf.mxu0
  %v891 = vpop.f32.mrf.mxu0
  %v892 = vadd.f32 %v716, %v891
  %v893 = vpop.f32.mrf.mxu0
  %894 = vmatprep.mubr.bf16.mxu0 0
  %895 = vmatmul.mubr.bf16.gmra.mxu0 %v691
  %v896 = vpop.f32.mrf.mxu0
  %v897 = vadd.f32 %v716, %v896
  %v898 = vpop.f32.mrf.mxu0
  %v899 = vpop.f32.mrf.mxu0
  %v900 = vadd.f32 %v716, %v899
  %v901 = vpop.f32.mrf.mxu0
  %902 = vmatprep.mubr.bf16.mxu0 0
  %903 = vmatmul.mubr.bf16.gmra.mxu0 %v692
  %v904 = vpop.f32.mrf.mxu0
  %v905 = vadd.f32 %v716, %v904
  %v906 = vpop.f32.mrf.mxu0
  %v907 = vpop.f32.mrf.mxu0
  %v908 = vadd.f32 %v716, %v907
  %v909 = vpop.f32.mrf.mxu0
  %910 = vmatprep.mubr.bf16.mxu0 0
  %911 = vmatmul.mubr.bf16.gmra.mxu0 %v693
  %v912 = vpop.f32.mrf.mxu0
  %v913 = vadd.f32 %v716, %v912
  %v914 = vpop.f32.mrf.mxu0
  %v915 = vpop.f32.mrf.mxu0
  %v916 = vadd.f32 %v716, %v915
  %v917 = vpop.f32.mrf.mxu0
  %918 = vmatprep.mubr.bf16.mxu0 0
  %919 = vmatmul.mubr.bf16.gmra.mxu0 %v694
  %v920 = vpop.f32.mrf.mxu0
  %v921 = vadd.f32 %v716, %v920
  %v922 = vpop.f32.mrf.mxu0
  %v923 = vpop.f32.mrf.mxu0
  %v924 = vadd.f32 %v716, %v923
  %v925 = vpop.f32.mrf.mxu0
  %926 = vdwg.mxu0
  %v927 = vlaneseq
  %v928 = vand.u32 %v927, 127
  %vm929 = vcmp.ge.s32.totalorder %v928, 18
  %v930 = vmax.f32 %v801, -20.0
  %v931 = vmax.f32 %v804, -20.0
  %v932 = vmax.f32 %v809, -20.0
  %v933 = vmax.f32 %v812, -20.0
  %v934 = vmax.f32 %v817, -20.0
  %v935 = vmax.f32 %v820, -20.0
  %v936 = vmax.f32 %v825, -20.0
  %v937 = vmax.f32 %v828, -20.0
  %v938 = vmax.f32 %v833, -20.0
  %v939 = vmax.f32 %v836, -20.0
  %v940 = vmax.f32 %v841, -20.0
  %v941 = vmax.f32 %v844, -20.0
  %v942 = vmax.f32 %v849, -20.0
  %v943 = vmax.f32 %v852, -20.0
  %v944 = vmax.f32 %v857, -20.0
  %v945 = vmax.f32 %v860, -20.0
  %v946 = vmax.f32 %v865, -20.0
  %v947 = vmax.f32 %v868, -20.0
  %v948 = vmax.f32 %v873, -20.0
  %v949 = vmax.f32 %v876, -20.0
  %v950 = vmax.f32 %v881, -20.0
  %v951 = vmax.f32 %v884, -20.0
  %v952 = vmax.f32 %v889, -20.0
  %v953 = vmax.f32 %v892, -20.0
  %v954 = vmax.f32 %v897, -20.0
  %v955 = vmax.f32 %v900, -20.0
  %v956 = vmax.f32 %v905, -20.0
  %v957 = vmax.f32 %v908, -20.0
  %v958 = vmax.f32 %v913, -20.0
  %v959 = vmax.f32 %v916, -20.0
  %v960 = vmax.f32 %v921, -20.0
  %v961 = vmax.f32 %v924, -20.0
  %v962 = vmin.f32 %v930, 2.0
  %v963 = vmin.f32 %v931, 2.0
  %v964 = vmin.f32 %v932, 2.0
  %v965 = vmin.f32 %v933, 2.0
  %v966 = vmin.f32 %v934, 2.0
  %v967 = vmin.f32 %v935, 2.0
  %v968 = vmin.f32 %v936, 2.0
  %v969 = vmin.f32 %v937, 2.0
  %v970 = vmin.f32 %v938, 2.0
  %v971 = vmin.f32 %v939, 2.0
  %v972 = vmin.f32 %v940, 2.0
  %v973 = vmin.f32 %v941, 2.0
  %v974 = vmin.f32 %v942, 2.0
  %v975 = vmin.f32 %v943, 2.0
  %v976 = vmin.f32 %v944, 2.0
  %v977 = vmin.f32 %v945, 2.0
  %v978 = vmin.f32 %v946, 2.0
  %v979 = vmin.f32 %v947, 2.0
  %v980 = vmin.f32 %v948, 2.0
  %v981 = vmin.f32 %v949, 2.0
  %v982 = vmin.f32 %v950, 2.0
  %v983 = vmin.f32 %v951, 2.0
  %v984 = vmin.f32 %v952, 2.0
  %v985 = vmin.f32 %v953, 2.0
  %v986 = vmin.f32 %v954, 2.0
  %v987 = vmin.f32 %v955, 2.0
  %v988 = vmin.f32 %v956, 2.0
  %v989 = vmin.f32 %v957, 2.0
  %v990 = vmin.f32 %v958, 2.0
  %v991 = vmin.f32 %v959, 2.0
  %v992 = vmin.f32 %v960, 2.0
  %v993 = vmin.f32 %v961, 2.0
  %v994 = vsel %vm929, %v962, %v801
  %v995 = vsel %vm929, %v963, %v804
  %v996 = vsel %vm929, %v964, %v809
  %v997 = vsel %vm929, %v965, %v812
  %v998 = vsel %vm929, %v966, %v817
  %v999 = vsel %vm929, %v967, %v820
  %v1000 = vsel %vm929, %v968, %v825
  %v1001 = vsel %vm929, %v969, %v828
  %v1002 = vsel %vm929, %v970, %v833
  %v1003 = vsel %vm929, %v971, %v836
  %v1004 = vsel %vm929, %v972, %v841
  %v1005 = vsel %vm929, %v973, %v844
  %v1006 = vsel %vm929, %v974, %v849
  %v1007 = vsel %vm929, %v975, %v852
  %v1008 = vsel %vm929, %v976, %v857
  %v1009 = vsel %vm929, %v977, %v860
  %v1010 = vsel %vm929, %v978, %v865
  %v1011 = vsel %vm929, %v979, %v868
  %v1012 = vsel %vm929, %v980, %v873
  %v1013 = vsel %vm929, %v981, %v876
  %v1014 = vsel %vm929, %v982, %v881
  %v1015 = vsel %vm929, %v983, %v884
  %v1016 = vsel %vm929, %v984, %v889
  %v1017 = vsel %vm929, %v985, %v892
  %v1018 = vsel %vm929, %v986, %v897
  %v1019 = vsel %vm929, %v987, %v900
  %v1020 = vsel %vm929, %v988, %v905
  %v1021 = vsel %vm929, %v989, %v908
  %v1022 = vsel %vm929, %v990, %v913
  %v1023 = vsel %vm929, %v991, %v916
  %v1024 = vsel %vm929, %v992, %v921
  %v1025 = vsel %vm929, %v993, %v924
  %1026 = vst [vmem:[%s7] sm:$0xff] %v994
  %1027 = vst [vmem:[%s7 + $0x8] sm:$0xff] %v995
  %1028 = vst [vmem:[%s7 + $0x10] sm:$0xff] %v996
  %1029 = vst [vmem:[%s7 + $0x18] sm:$0xff] %v997
  %1030 = vst [vmem:[%s7 + $0x20] sm:$0xff] %v998
  %1031 = vst [vmem:[%s7 + $0x28] sm:$0xff] %v999
  %1032 = vst [vmem:[%s7 + $0x30] sm:$0xff] %v1000
  %1033 = vst [vmem:[%s7 + $0x38] sm:$0xff] %v1001
  %1034 = vst [vmem:[%s7 + $0x40] sm:$0xff] %v1002
  %1035 = vst [vmem:[%s7 + $0x48] sm:$0xff] %v1003
  %1036 = vst [vmem:[%s7 + $0x50] sm:$0xff] %v1004
  %1037 = vst [vmem:[%s7 + $0x58] sm:$0xff] %v1005
  %1038 = vst [vmem:[%s7 + $0x60] sm:$0xff] %v1006
  %1039 = vst [vmem:[%s7 + $0x68] sm:$0xff] %v1007
  %1040 = vst [vmem:[%s7 + $0x70] sm:$0xff] %v1008
  %1041 = vst [vmem:[%s7 + $0x78] sm:$0xff] %v1009
  %1042 = vst [vmem:[%s7 + $0x80] sm:$0xff] %v1010
  %1043 = vst [vmem:[%s7 + $0x88] sm:$0xff] %v1011
  %1044 = vst [vmem:[%s7 + $0x90] sm:$0xff] %v1012
  %1045 = vst [vmem:[%s7 + $0x98] sm:$0xff] %v1013
  %1046 = vst [vmem:[%s7 + $0xa0] sm:$0xff] %v1014
  %1047 = vst [vmem:[%s7 + $0xa8] sm:$0xff] %v1015
  %1048 = vst [vmem:[%s7 + $0xb0] sm:$0xff] %v1016
  %1049 = vst [vmem:[%s7 + $0xb8] sm:$0xff] %v1017
  %1050 = vst [vmem:[%s7 + $0xc0] sm:$0xff] %v1018
  %1051 = vst [vmem:[%s7 + $0xc8] sm:$0xff] %v1019
  %1052 = vst [vmem:[%s7 + $0xd0] sm:$0xff] %v1020
  %1053 = vst [vmem:[%s7 + $0xd8] sm:$0xff] %v1021
  %1054 = vst [vmem:[%s7 + $0xe0] sm:$0xff] %v1022
  %1055 = vst [vmem:[%s7 + $0xe8] sm:$0xff] %v1023
  %1056 = vst [vmem:[%s7 + $0xf0] sm:$0xff] %v1024
  %1057 = vst [vmem:[%s7 + $0xf8] sm:$0xff] %v1025
  // Predicated region
  $region30: #{_actor_padded_forward.1} parent=0 // pred_check
    _
  $region31: #{_actor_padded_forward.1} parent=0 // pred_check_branch
    %1059 = sbr.rel (0) target = $region33
  $region32: #{_actor_padded_forward.1} parent=0 // pred_region
    _
  $region33: #{_actor_padded_forward.1} parent=0 // pred_fallthru
    _
  // Predicated region
  $region34: #{_actor_padded_forward.1} parent=0 // pred_check
    _
  $region35: #{_actor_padded_forward.1} parent=0 // pred_check_branch
    %1061 = sbr.rel (0) target = $region37
  $region36: #{_actor_padded_forward.1} parent=0 // pred_region
    _
  $region37: #{_actor_padded_forward.1} parent=0 // pred_fallthru
    _

</llo_original>
